<compile_context>
chip_gen: v5e
topology: v5e:2x2
jax: 0.10.0
libtpu: 0.0.40
codegen_flags: <defaults>
</compile_context>

<pallas_src>
import jax
import jax.numpy as jnp
from jax import lax
from jax.experimental import pallas as pl
from jax.experimental.pallas import tpu as pltpu


def _leaky_relu(x):
    # max(x, 0.01*x) == LeakyReLU(negative_slope=0.01) for slope < 1.
    return jnp.maximum(x, 0.01 * x)


def _shift_flat(x, s):
    """y[:, p] = x[:, p + s] if 0 <= p + s < P else 0   (s is a static int)."""
    if s == 0:
        return x
    nrows, P = x.shape
    pad = jnp.zeros((nrows, abs(s)), x.dtype)
    if s > 0:
        return jnp.concatenate([x[:, s:], pad], axis=1)
    return jnp.concatenate([pad, x[:, :P + s]], axis=1)


def _make_resblock_kernel(NB, C, H, W):
    P = H * W
    R = NB * C            # rows handled per grid step (NB images x C channels)

    def kernel(x_ref, w1_ref, w2_ref, o_ref):
        # x_ref / o_ref : (R, P) f32
        # w1_ref / w2_ref : (R, 9*R + 1) f32  (block-diagonal weight + bias col)
        x = x_ref[...]                                          # (R, P)

        # Column index inside each image row (same for every (n, c) plane).
        col = lax.broadcasted_iota(jnp.int32, (R, P), 1) % W
        m_left = col >= 1            # source column w-1 exists
        m_right = col <= (W - 2)     # source column w+1 exists
        ones_row = jnp.ones((1, P), jnp.float32)

        def patches_of(a):
            """Stack 9 shifted+masked copies of `a` plus a bias ones-row."""
            taps = []
            for ky in range(3):
                for kx in range(3):
                    dy, dx = ky - 1, kx - 1
                    t = _shift_flat(a, dy * W + dx)
                    if dx == -1:
                        t = jnp.where(m_left, t, 0.0)
                    elif dx == 1:
                        t = jnp.where(m_right, t, 0.0)
                    taps.append(t)
            return jnp.concatenate(taps + [ones_row], axis=0)   # (9R + 1, P)

        def conv3x3(a, w_ref):
            # Single MXU issue per conv: (R, 9R+1) x (9R+1, P) -> (R, P).
            return jnp.dot(w_ref[...], patches_of(a),
                           preferred_element_type=jnp.float32)

        h = _leaky_relu(conv3x3(x, w1_ref))
        # TODO(synk): training-mode Dropout2d/Dropout (p > 0) not implemented;
        #             the module is built with dropout=0 -> Identity.
        h = conv3x3(h, w2_ref)
        o_ref[...] = _leaky_relu(x + h).astype(o_ref.dtype)

    return kernel


def _build_block_weight(w_hwio, b, NB):
    """(3,3,C,C) HWIO weight + (1,C) bias -> (NB*C, 9*NB*C + 1) block-diag.

    W_big[n*C + co, tap*NB*C + m*C + ci] = w_hwio[ky, kx, ci, co] * (m == n)
    with tap = ky*3 + kx, and the last column holds the bias (matching the
    ones-row appended to the patches inside the kernel).
    """
    C = w_hwio.shape[-1]
    w2d = w_hwio.reshape(9 * C, C).T            # (C_out, 9*C_in)
    w_taps = w2d.reshape(C, 9, C)               # (C_out, tap, C_in)
    eye = jnp.eye(NB, dtype=w_hwio.dtype)
    blk = jnp.einsum('nm,otc->notmc', eye, w_taps)      # (NB, C, 9, NB, C)
    w_big = blk.reshape(NB * C, 9 * NB * C)
    bias_col = jnp.tile(b.reshape(C), NB).reshape(NB * C, 1)
    return jnp.concatenate([w_big, bias_col], axis=1)   # (NB*C, 9*NB*C + 1)


def resblock_forward_nchw(x_nchw, w1_hwio, b1, w2_hwio, b2, block_batch=None):
    """x: (N, C, H, W) f32; weights HWIO (3, 3, C, C); biases (1, C)."""
    N, C, H, W = x_nchw.shape
    P = H * W
    NB = N if block_batch is None else block_batch   # images per grid step
    assert N % NB == 0
    G = N // NB
    R = NB * C
    K = 9 * R + 1

    # Free reshape (NCHW is already channel-major): spatial goes on lanes.
    xf = x_nchw.reshape(N * C, P)
    w1_big = _build_block_weight(w1_hwio, b1, NB)
    w2_big = _build_block_weight(w2_hwio, b2, NB)

    yf = pl.pallas_call(
        _make_resblock_kernel(NB, C, H, W),
        out_shape=jax.ShapeDtypeStruct((N * C, P), x_nchw.dtype),
        grid=(G,),
        in_specs=[
            pl.BlockSpec((R, P), lambda i: (i, 0)),
            pl.BlockSpec((R, K), lambda i: (0, 0)),
            pl.BlockSpec((R, K), lambda i: (0, 0)),
        ],
        out_specs=pl.BlockSpec((R, P), lambda i: (i, 0)),
        compiler_params=pltpu.CompilerParams(
            dimension_semantics=("parallel",)),
    )(xf, w1_big, w2_big)
    return yf.reshape(N, C, H, W)


def _reference_nchw(x, w1, b1, w2, b2):
    """Pure-JAX reference (NCHW / HWIO) for correctness checking."""
    dn = ('NCHW', 'HWIO', 'NCHW')
    hi = lax.Precision.HIGHEST
    h = lax.conv_general_dilated(x, w1, (1, 1), 'SAME',
                                 dimension_numbers=dn, precision=hi)
    h = _leaky_relu(h + b1.reshape(1, -1, 1, 1))
    h = lax.conv_general_dilated(h, w2, (1, 1), 'SAME',
                                 dimension_numbers=dn, precision=hi)
    h = h + b2.reshape(1, -1, 1, 1)
    return _leaky_relu(x + h)


if __name__ == "__main__":
    N, C, H, W = 2, 4, 16, 16  # small shapes consistent with the module

    key = jax.random.PRNGKey(0)
    kx, kw1, kb1, kw2, kb2 = jax.random.split(key, 5)

    # PyTorch-like uniform(-1/sqrt(fan_in), +1/sqrt(fan_in)) init.
    fan_in = C * 3 * 3
    bound = 1.0 / (fan_in ** 0.5)
    w1 = jax.random.uniform(kw1, (3, 3, C, C), jnp.float32, -bound, bound)
    b1 = jax.random.uniform(kb1, (1, C), jnp.float32, -bound, bound)
    w2 = jax.random.uniform(kw2, (3, 3, C, C), jnp.float32, -bound, bound)
    b2 = jax.random.uniform(kb2, (1, C), jnp.float32, -bound, bound)

    # Input in PyTorch NCHW convention.
    x_nchw = jax.random.normal(kx, (N, C, H, W), jnp.float32)

    y = resblock_forward_nchw(x_nchw, w1, b1, w2, b2)
    y = jax.block_until_ready(y)

    # Verify against a pure-JAX reference.
    y_ref = _reference_nchw(x_nchw, w1, b1, w2, b2)
    assert y.shape == (N, C, H, W)
    assert jnp.allclose(y, y_ref, atol=1e-4, rtol=1e-4)

    print("KERNEL_OK")
</pallas_src>

<mosaic_0001>
module attributes {stable_mosaic.version = 11 : i64} {
  func.func @kernel(%arg0: i32, %arg1: memref<8x256xf32, #tpu.memory_space<vmem>>, %arg2: memref<8x73xf32, #tpu.memory_space<vmem>>, %arg3: memref<8x73xf32, #tpu.memory_space<vmem>>, %arg4: memref<8x256xf32, #tpu.memory_space<vmem>>) attributes {dimension_semantics = [#tpu.dimension_semantics<parallel>], iteration_bounds = array<i64: 1>, scalar_prefetch = 0 : i64, scratch_operands = 0 : i64, tpu.core_type = #tpu.core_type<tc>, window_params = [{transform_indices = @transform_0, window_bounds = array<i64: 8, 256>}, {pipeline_mode = #tpu.pipeline_mode<synchronous>, transform_indices = @transform_1, window_bounds = array<i64: 8, 73>}, {pipeline_mode = #tpu.pipeline_mode<synchronous>, transform_indices = @transform_2, window_bounds = array<i64: 8, 73>}, {transform_indices = @transform_3, window_bounds = array<i64: 8, 256>}]} {
    %c0 = arith.constant 0 : index
    %c0_0 = arith.constant 0 : index
    %0 = vector.load %arg1[%c0, %c0_0] : memref<8x256xf32, #tpu.memory_space<vmem>>, vector<8x256xf32>
    %1 = tpu.iota {dimensions = array<i32: 1>} : vector<8x256xi32>
    %c16_i32 = arith.constant 16 : i32
    %c0_i32 = arith.constant 0 : i32
    %2 = arith.cmpi eq, %c16_i32, %c0_i32 : i32
    %c1_i32 = arith.constant 1 : i32
    %3 = arith.select %2, %c1_i32, %c16_i32 : i32
    %4 = vector.broadcast %3 : i32 to vector<8x256xi32>
    %5 = arith.remsi %1, %4 : vector<8x256xi32>
    %c0_i32_1 = arith.constant 0 : i32
    %6 = vector.broadcast %c0_i32_1 : i32 to vector<8x256xi32>
    %7 = arith.cmpi ne, %5, %6 : vector<8x256xi32>
    %c0_i32_2 = arith.constant 0 : i32
    %8 = vector.broadcast %c0_i32_2 : i32 to vector<8x256xi32>
    %9 = arith.cmpi slt, %5, %8 : vector<8x256xi32>
    %c0_i32_3 = arith.constant 0 : i32
    %10 = arith.cmpi slt, %3, %c0_i32_3 : i32
    %11 = vector.broadcast %10 : i1 to vector<8x256xi1>
    %12 = vector.broadcast %11 : vector<8x256xi1> to vector<8x256xi1>
    %13 = arith.xori %9, %12 : vector<8x256xi1>
    %14 = arith.andi %13, %7 : vector<8x256xi1>
    %15 = vector.broadcast %3 : i32 to vector<8x256xi32>
    %16 = arith.addi %5, %15 : vector<8x256xi32>
    %17 = arith.select %14, %16, %5 : vector<8x256xi1>, vector<8x256xi32>
    %c1_i32_4 = arith.constant 1 : i32
    %18 = vector.broadcast %c1_i32_4 : i32 to vector<8x256xi32>
    %19 = arith.cmpi sge, %17, %18 : vector<8x256xi32>
    %c14_i32 = arith.constant 14 : i32
    %20 = vector.broadcast %c14_i32 : i32 to vector<8x256xi32>
    %21 = arith.cmpi sle, %17, %20 : vector<8x256xi32>
    %cst = arith.constant 1.000000e+00 : f32
    %22 = vector.broadcast %cst : f32 to vector<1x256xf32>
    %c0_5 = arith.constant 0 : index
    %c0_6 = arith.constant 0 : index
    %23 = vector.load %arg2[%c0_5, %c0_6] : memref<8x73xf32, #tpu.memory_space<vmem>>, vector<8x73xf32>
    %cst_7 = arith.constant 0.000000e+00 : f32
    %24 = vector.broadcast %cst_7 : f32 to vector<8x17xf32>
    %25 = vector.extract_strided_slice %0 {offsets = [0, 0], sizes = [8, 239], strides = [1, 1]} : vector<8x256xf32> to vector<8x239xf32>
    %26 = tpu.concatenate %24, %25 in 1 : vector<8x17xf32>, vector<8x239xf32> -> vector<8x256xf32>
    %cst_8 = arith.constant 0.000000e+00 : f32
    %27 = vector.broadcast %cst_8 : f32 to vector<8x256xf32>
    %28 = arith.select %19, %26, %27 : vector<8x256xi1>, vector<8x256xf32>
    %cst_9 = arith.constant 0.000000e+00 : f32
    %29 = vector.broadcast %cst_9 : f32 to vector<8x16xf32>
    %30 = vector.extract_strided_slice %0 {offsets = [0, 0], sizes = [8, 240], strides = [1, 1]} : vector<8x256xf32> to vector<8x240xf32>
    %31 = tpu.concatenate %29, %30 in 1 : vector<8x16xf32>, vector<8x240xf32> -> vector<8x256xf32>
    %cst_10 = arith.constant 0.000000e+00 : f32
    %32 = vector.broadcast %cst_10 : f32 to vector<8x15xf32>
    %33 = vector.extract_strided_slice %0 {offsets = [0, 0], sizes = [8, 241], strides = [1, 1]} : vector<8x256xf32> to vector<8x241xf32>
    %34 = tpu.concatenate %32, %33 in 1 : vector<8x15xf32>, vector<8x241xf32> -> vector<8x256xf32>
    %cst_11 = arith.constant 0.000000e+00 : f32
    %35 = vector.broadcast %cst_11 : f32 to vector<8x256xf32>
    %36 = arith.select %21, %34, %35 : vector<8x256xi1>, vector<8x256xf32>
    %cst_12 = arith.constant 0.000000e+00 : f32
    %37 = vector.broadcast %cst_12 : f32 to vector<8x1xf32>
    %38 = vector.extract_strided_slice %0 {offsets = [0, 0], sizes = [8, 255], strides = [1, 1]} : vector<8x256xf32> to vector<8x255xf32>
    %39 = tpu.concatenate %37, %38 in 1 : vector<8x1xf32>, vector<8x255xf32> -> vector<8x256xf32>
    %cst_13 = arith.constant 0.000000e+00 : f32
    %40 = vector.broadcast %cst_13 : f32 to vector<8x256xf32>
    %41 = arith.select %19, %39, %40 : vector<8x256xi1>, vector<8x256xf32>
    %cst_14 = arith.constant 0.000000e+00 : f32
    %42 = vector.broadcast %cst_14 : f32 to vector<8x1xf32>
    %43 = vector.extract_strided_slice %0 {offsets = [0, 1], sizes = [8, 255], strides = [1, 1]} : vector<8x256xf32> to vector<8x255xf32>
    %44 = tpu.concatenate %43, %42 in 1 : vector<8x255xf32>, vector<8x1xf32> -> vector<8x256xf32>
    %cst_15 = arith.constant 0.000000e+00 : f32
    %45 = vector.broadcast %cst_15 : f32 to vector<8x256xf32>
    %46 = arith.select %21, %44, %45 : vector<8x256xi1>, vector<8x256xf32>
    %cst_16 = arith.constant 0.000000e+00 : f32
    %47 = vector.broadcast %cst_16 : f32 to vector<8x15xf32>
    %48 = vector.extract_strided_slice %0 {offsets = [0, 15], sizes = [8, 241], strides = [1, 1]} : vector<8x256xf32> to vector<8x241xf32>
    %49 = tpu.concatenate %48, %47 in 1 : vector<8x241xf32>, vector<8x15xf32> -> vector<8x256xf32>
    %cst_17 = arith.constant 0.000000e+00 : f32
    %50 = vector.broadcast %cst_17 : f32 to vector<8x256xf32>
    %51 = arith.select %19, %49, %50 : vector<8x256xi1>, vector<8x256xf32>
    %cst_18 = arith.constant 0.000000e+00 : f32
    %52 = vector.broadcast %cst_18 : f32 to vector<8x16xf32>
    %53 = vector.extract_strided_slice %0 {offsets = [0, 16], sizes = [8, 240], strides = [1, 1]} : vector<8x256xf32> to vector<8x240xf32>
    %54 = tpu.concatenate %53, %52 in 1 : vector<8x240xf32>, vector<8x16xf32> -> vector<8x256xf32>
    %cst_19 = arith.constant 0.000000e+00 : f32
    %55 = vector.broadcast %cst_19 : f32 to vector<8x17xf32>
    %56 = vector.extract_strided_slice %0 {offsets = [0, 17], sizes = [8, 239], strides = [1, 1]} : vector<8x256xf32> to vector<8x239xf32>
    %57 = tpu.concatenate %56, %55 in 1 : vector<8x239xf32>, vector<8x17xf32> -> vector<8x256xf32>
    %cst_20 = arith.constant 0.000000e+00 : f32
    %58 = vector.broadcast %cst_20 : f32 to vector<8x256xf32>
    %59 = arith.select %21, %57, %58 : vector<8x256xi1>, vector<8x256xf32>
    %60 = tpu.concatenate %28, %31, %36, %41, %0, %46, %51, %54, %59, %22 in 0 : vector<8x256xf32>, vector<8x256xf32>, vector<8x256xf32>, vector<8x256xf32>, vector<8x256xf32>, vector<8x256xf32>, vector<8x256xf32>, vector<8x256xf32>, vector<8x256xf32>, vector<1x256xf32> -> vector<73x256xf32>
    %cst_21 = arith.constant dense<0.000000e+00> : vector<8x256xf32>
    %61 = tpu.matmul %23, %60, %cst_21 {dimension_numbers = #tpu.dot_dimension_numbers<[1], [0], [0], [1], [0, 0, 1, 1], [], []>} : vector<8x73xf32>, vector<73x256xf32>, vector<8x256xf32> -> vector<8x256xf32>
    %cst_22 = arith.constant 0.00999999977 : f32
    %62 = vector.broadcast %cst_22 : f32 to vector<8x256xf32>
    %63 = arith.mulf %62, %61 : vector<8x256xf32>
    %64 = arith.maximumf %61, %63 : vector<8x256xf32>
    %c0_23 = arith.constant 0 : index
    %c0_24 = arith.constant 0 : index
    %65 = vector.load %arg3[%c0_23, %c0_24] : memref<8x73xf32, #tpu.memory_space<vmem>>, vector<8x73xf32>
    %cst_25 = arith.constant 0.000000e+00 : f32
    %66 = vector.broadcast %cst_25 : f32 to vector<8x17xf32>
    %67 = vector.extract_strided_slice %64 {offsets = [0, 0], sizes = [8, 239], strides = [1, 1]} : vector<8x256xf32> to vector<8x239xf32>
    %68 = tpu.concatenate %66, %67 in 1 : vector<8x17xf32>, vector<8x239xf32> -> vector<8x256xf32>
    %cst_26 = arith.constant 0.000000e+00 : f32
    %69 = vector.broadcast %cst_26 : f32 to vector<8x256xf32>
    %70 = arith.select %19, %68, %69 : vector<8x256xi1>, vector<8x256xf32>
    %cst_27 = arith.constant 0.000000e+00 : f32
    %71 = vector.broadcast %cst_27 : f32 to vector<8x16xf32>
    %72 = vector.extract_strided_slice %64 {offsets = [0, 0], sizes = [8, 240], strides = [1, 1]} : vector<8x256xf32> to vector<8x240xf32>
    %73 = tpu.concatenate %71, %72 in 1 : vector<8x16xf32>, vector<8x240xf32> -> vector<8x256xf32>
    %cst_28 = arith.constant 0.000000e+00 : f32
    %74 = vector.broadcast %cst_28 : f32 to vector<8x15xf32>
    %75 = vector.extract_strided_slice %64 {offsets = [0, 0], sizes = [8, 241], strides = [1, 1]} : vector<8x256xf32> to vector<8x241xf32>
    %76 = tpu.concatenate %74, %75 in 1 : vector<8x15xf32>, vector<8x241xf32> -> vector<8x256xf32>
    %cst_29 = arith.constant 0.000000e+00 : f32
    %77 = vector.broadcast %cst_29 : f32 to vector<8x256xf32>
    %78 = arith.select %21, %76, %77 : vector<8x256xi1>, vector<8x256xf32>
    %cst_30 = arith.constant 0.000000e+00 : f32
    %79 = vector.broadcast %cst_30 : f32 to vector<8x1xf32>
    %80 = vector.extract_strided_slice %64 {offsets = [0, 0], sizes = [8, 255], strides = [1, 1]} : vector<8x256xf32> to vector<8x255xf32>
    %81 = tpu.concatenate %79, %80 in 1 : vector<8x1xf32>, vector<8x255xf32> -> vector<8x256xf32>
    %cst_31 = arith.constant 0.000000e+00 : f32
    %82 = vector.broadcast %cst_31 : f32 to vector<8x256xf32>
    %83 = arith.select %19, %81, %82 : vector<8x256xi1>, vector<8x256xf32>
    %cst_32 = arith.constant 0.000000e+00 : f32
    %84 = vector.broadcast %cst_32 : f32 to vector<8x1xf32>
    %85 = vector.extract_strided_slice %64 {offsets = [0, 1], sizes = [8, 255], strides = [1, 1]} : vector<8x256xf32> to vector<8x255xf32>
    %86 = tpu.concatenate %85, %84 in 1 : vector<8x255xf32>, vector<8x1xf32> -> vector<8x256xf32>
    %cst_33 = arith.constant 0.000000e+00 : f32
    %87 = vector.broadcast %cst_33 : f32 to vector<8x256xf32>
    %88 = arith.select %21, %86, %87 : vector<8x256xi1>, vector<8x256xf32>
    %cst_34 = arith.constant 0.000000e+00 : f32
    %89 = vector.broadcast %cst_34 : f32 to vector<8x15xf32>
    %90 = vector.extract_strided_slice %64 {offsets = [0, 15], sizes = [8, 241], strides = [1, 1]} : vector<8x256xf32> to vector<8x241xf32>
    %91 = tpu.concatenate %90, %89 in 1 : vector<8x241xf32>, vector<8x15xf32> -> vector<8x256xf32>
    %cst_35 = arith.constant 0.000000e+00 : f32
    %92 = vector.broadcast %cst_35 : f32 to vector<8x256xf32>
    %93 = arith.select %19, %91, %92 : vector<8x256xi1>, vector<8x256xf32>
    %cst_36 = arith.constant 0.000000e+00 : f32
    %94 = vector.broadcast %cst_36 : f32 to vector<8x16xf32>
    %95 = vector.extract_strided_slice %64 {offsets = [0, 16], sizes = [8, 240], strides = [1, 1]} : vector<8x256xf32> to vector<8x240xf32>
    %96 = tpu.concatenate %95, %94 in 1 : vector<8x240xf32>, vector<8x16xf32> -> vector<8x256xf32>
    %cst_37 = arith.constant 0.000000e+00 : f32
    %97 = vector.broadcast %cst_37 : f32 to vector<8x17xf32>
    %98 = vector.extract_strided_slice %64 {offsets = [0, 17], sizes = [8, 239], strides = [1, 1]} : vector<8x256xf32> to vector<8x239xf32>
    %99 = tpu.concatenate %98, %97 in 1 : vector<8x239xf32>, vector<8x17xf32> -> vector<8x256xf32>
    %cst_38 = arith.constant 0.000000e+00 : f32
    %100 = vector.broadcast %cst_38 : f32 to vector<8x256xf32>
    %101 = arith.select %21, %99, %100 : vector<8x256xi1>, vector<8x256xf32>
    %102 = tpu.concatenate %70, %73, %78, %83, %64, %88, %93, %96, %101, %22 in 0 : vector<8x256xf32>, vector<8x256xf32>, vector<8x256xf32>, vector<8x256xf32>, vector<8x256xf32>, vector<8x256xf32>, vector<8x256xf32>, vector<8x256xf32>, vector<8x256xf32>, vector<1x256xf32> -> vector<73x256xf32>
    %cst_39 = arith.constant dense<0.000000e+00> : vector<8x256xf32>
    %103 = tpu.matmul %65, %102, %cst_39 {dimension_numbers = #tpu.dot_dimension_numbers<[1], [0], [0], [1], [0, 0, 1, 1], [], []>} : vector<8x73xf32>, vector<73x256xf32>, vector<8x256xf32> -> vector<8x256xf32>
    %104 = arith.addf %0, %103 : vector<8x256xf32>
    %cst_40 = arith.constant 0.00999999977 : f32
    %105 = vector.broadcast %cst_40 : f32 to vector<8x256xf32>
    %106 = arith.mulf %105, %104 : vector<8x256xf32>
    %107 = arith.maximumf %104, %106 : vector<8x256xf32>
    %c0_41 = arith.constant 0 : index
    %c0_42 = arith.constant 0 : index
    %108 = vector.load %arg4[%c0_41, %c0_42] : memref<8x256xf32, #tpu.memory_space<vmem>>, vector<8x256xf32>
    tpu.vector_store %arg4[%c0_41, %c0_42], %107 {strides = array<i32>} : memref<8x256xf32, #tpu.memory_space<vmem>>, vector<8x256xf32>,
    return
  }
  func.func @transform_0(%arg0: i32) -> (i32, i32) {
    %c0_i32 = arith.constant 0 : i32
    %c0_i32_0 = arith.constant 0 : i32
    return %arg0, %c0_i32 : i32, i32
  }
  func.func @transform_1(%arg0: i32) -> (i32, i32) {
    %c0_i32 = arith.constant 0 : i32
    %c0_i32_0 = arith.constant 0 : i32
    %c0_i32_1 = arith.constant 0 : i32
    return %c0_i32, %c0_i32_0 : i32, i32
  }
  func.func @transform_2(%arg0: i32) -> (i32, i32) {
    %c0_i32 = arith.constant 0 : i32
    %c0_i32_0 = arith.constant 0 : i32
    %c0_i32_1 = arith.constant 0 : i32
    return %c0_i32, %c0_i32_0 : i32, i32
  }
  func.func @transform_3(%arg0: i32) -> (i32, i32) {
    %c0_i32 = arith.constant 0 : i32
    %c0_i32_0 = arith.constant 0 : i32
    return %arg0, %c0_i32 : i32, i32
  }
}

</mosaic_0001>

<llo_original>
// kernel: tpu_custom_call.1
$region0: #{tpu_custom_call.1}
  #allocation0 [shape = 'u32[]', space=smem, size = 0x4, offset = 0x4, fixed_abs, tag = 'smem constant byte address 0x4 - core index']
  #allocation1 [shape = 'u32[72,128]{1,0:T(1,128)}', space=vmem, size = 0x9000, scoped, tag = 'internal scratch']
  %s0 = inlined_call_operand.hbm [shape: f32[8,256], index: 0, kind: input, shape index: {}]
  %s1 = inlined_call_operand.hbm [shape: f32[8,73], index: 1, kind: input, shape index: {}]
  %s2 = inlined_call_operand.hbm [shape: f32[8,73], index: 2, kind: input, shape index: {}]
  %s3 = inlined_call_operand.hbm [shape: f32[8,256], index: 3, kind: output, shape index: {}]
  %s4 = sld [smem:[#allocation0]]
  $region34: #{tpu_custom_call.1} parent=0
    _
  %s6 = ssub.s32 1, %s4
  %s7 = scalar_select 0, %s6, %s4
  $region1: #{tpu_custom_call.1} parent=0
    #allocation2 [shape = 'u8[8192]{0}', space=vmem, size = 0x2000, scoped, tag = 'input window, operand 0, single buffered']
    #allocation3 [shape = 's32[1]{0}', space=sflag, size = 0x4, scoped, tag = 'scoped memory for tpu_custom_call.1']
    #allocation4 [shape = 's32[1]{0}', space=sflag, size = 0x4, scoped, tag = 'scoped memory for tpu_custom_call.1']
    #allocation5 [shape = 'u8[4096]{0}', space=vmem, size = 0x1000, scoped, tag = 'input window, operand 1, single buffered']
    #allocation6 [shape = 's32[1]{0}', space=sflag, size = 0x4, scoped, tag = 'scoped memory for tpu_custom_call.1']
    #allocation7 [shape = 'u8[4096]{0}', space=vmem, size = 0x1000, scoped, tag = 'input window, operand 2, single buffered']
    #allocation8 [shape = 'u8[8192]{0}', space=vmem, size = 0x2000, scoped, tag = 'output window, operand 0, single buffered']
    %8 = vsyncpa [#allocation3], 0
    %9 = vsyncpa [#allocation6], 0
    %10 = vsyncpa [#allocation4], 0
    // Predicated region
    $region2: #{tpu_custom_call.1} parent=1 // pred_check
      _
    $region3: #{tpu_custom_call.1} parent=1 // pred_check_branch
      %12 = sbr.rel (0) target = $region5
    $region4: #{tpu_custom_call.1} parent=1 // pred_region
      %14 = vsyncadd [#allocation3], 0
      %s16 = sshll.u32 %s0, 4
      %s17 = int_to_ptr.hbm [resolvable:$true] %s16
      %s18 = sshll.u32 [#allocation2], 4
      %s19 = int_to_ptr.vmem [resolvable:$true] %s18
      %21 = dma.hbm_to_vmem [thread:$0]  %s17, 256, %s19, [#allocation3]
    $region5: #{tpu_custom_call.1} parent=1 // pred_fallthru
      _
    // Predicated region
    $region6: #{tpu_custom_call.1} parent=1 // pred_check
      _
    $region7: #{tpu_custom_call.1} parent=1 // pred_check_branch
      %23 = sbr.rel (0) target = $region9
    $region8: #{tpu_custom_call.1} parent=1 // pred_region
      %25 = vsyncadd [#allocation6], 0
      %s27 = sshll.u32 %s1, 4
      %s28 = int_to_ptr.hbm [resolvable:$true] %s27
      %s29 = sshll.u32 [#allocation5], 4
      %s30 = int_to_ptr.vmem [resolvable:$true] %s29
      %32 = dma.hbm_to_vmem [thread:$0]  %s28, 128, %s30, [#allocation6]
    $region9: #{tpu_custom_call.1} parent=1 // pred_fallthru
      _
    // Predicated region
    $region10: #{tpu_custom_call.1} parent=1 // pred_check
      _
    $region11: #{tpu_custom_call.1} parent=1 // pred_check_branch
      %34 = sbr.rel (0) target = $region13
    $region12: #{tpu_custom_call.1} parent=1 // pred_region
      %36 = vsyncadd [#allocation6], 0
      %s38 = sshll.u32 %s2, 4
      %s39 = int_to_ptr.hbm [resolvable:$true] %s38
      %s40 = sshll.u32 [#allocation7], 4
      %s41 = int_to_ptr.vmem [resolvable:$true] %s40
      %43 = dma.hbm_to_vmem [thread:$0]  %s39, 128, %s41, [#allocation6]
    $region13: #{tpu_custom_call.1} parent=1 // pred_fallthru
      _
    // Predicated region
    $region14: #{tpu_custom_call.1} parent=1 // pred_check
      _
    $region15: #{tpu_custom_call.1} parent=1 // pred_check_branch
      %45 = sbr.rel (0) target = $region17
    $region16: #{tpu_custom_call.1} parent=1 // pred_region
      %47 = dma.done [#allocation3], 256
    $region17: #{tpu_custom_call.1} parent=1 // pred_fallthru
      _
    // Predicated region
    $region18: #{tpu_custom_call.1} parent=1 // pred_check
      _
    $region19: #{tpu_custom_call.1} parent=1 // pred_check_branch
      %49 = sbr.rel (0) target = $region21
    $region20: #{tpu_custom_call.1} parent=1 // pred_region
      %51 = dma.done [#allocation6], 128
    $region21: #{tpu_custom_call.1} parent=1 // pred_fallthru
      _
    // Predicated region
    $region22: #{tpu_custom_call.1} parent=1 // pred_check
      _
    $region23: #{tpu_custom_call.1} parent=1 // pred_check_branch
      %53 = sbr.rel (0) target = $region25
    $region24: #{tpu_custom_call.1} parent=1 // pred_region
      %55 = dma.done [#allocation6], 128
    $region25: #{tpu_custom_call.1} parent=1 // pred_fallthru
      _
    %v56 = vld [vmem:[#allocation2] sm:$0xff]
    %v57 = vld [vmem:[#allocation2 + $0x8] sm:$0xff]
    %v58 = vlaneseq
    %v59 = vand.u32 %v58, 127
    %v60 = vadd.s32 %v59, 128
    %vm61 = vcmp.lt.s32.totalorder %v59, 0
    %v62 = vsub.s32 0, %v59
    %v63 = vsel %vm61, %v62, %v59
    %v64 = vshrl.u32 %v63, 4
    %v65 = vand.u32 %v63, 15
    %v66 = vsub.s32 0, %v65
    %v67 = vsel %vm61, %v66, %v65
    %vm68 = vcmp.lt.s32.totalorder %v60, 0
    %v69 = vsub.s32 0, %v60
    %v70 = vsel %vm68, %v69, %v60
    %v71 = vshrl.u32 %v70, 4
    %v72 = vand.u32 %v70, 15
    %v73 = vsub.s32 0, %v72
    %v74 = vsel %vm68, %v73, %v72
    %vm75 = vcmp.ne.s32.totalorder %v67, 0
    %vm76 = vcmp.ne.s32.totalorder %v74, 0
    %vm77 = vcmp.lt.s32.totalorder %v67, 0
    %vm78 = vcmp.lt.s32.totalorder %v74, 0
    %vm79 = vmand %vm77, %vm75
    %vm80 = vmand %vm78, %vm76
    %v81 = vadd.s32 %v67, 16
    %v82 = vadd.s32 %v74, 16
    %v83 = vsel %vm79, %v81, %v67
    %v84 = vsel %vm80, %v82, %v74
    %vm85 = vcmp.ge.s32.totalorder %v83, 1
    %vm86 = vcmp.ge.s32.totalorder %v84, 1
    %vm87 = vcmp.le.s32.totalorder %v83, 14
    %vm88 = vcmp.le.s32.totalorder %v84, 14
    %v89 = vld [vmem:[#allocation5] sm:$0xff]
    %92 = vrot.lane.b32.xlu0 %v56, 17
    %v93 = vpop.permute.xlu0 %92
    %94 = vrot.lane.b32.xlu0 %v57, 17
    %v95 = vpop.permute.xlu0 %94
    %vm96 = vcmask 138240
    %v97 = vsel %vm96, %v93, %v95
    %v100 = vsel %vm96, 0.0, %v93
    %v101 = vsel %vm85, %v100, 0.0
    %v102 = vsel %vm86, %v97, 0.0
    %103 = vrot.lane.b32.xlu0 %v56, 16
    %v104 = vpop.permute.xlu0 %103
    %105 = vrot.lane.b32.xlu0 %v57, 16
    %v106 = vpop.permute.xlu0 %105
    %vm107 = vcmask 130048
    %v108 = vsel %vm107, %v104, %v106
    %v111 = vsel %vm107, 0.0, %v104
    %112 = vrot.lane.b32.xlu0 %v56, 15
    %v113 = vpop.permute.xlu0 %112
    %114 = vrot.lane.b32.xlu0 %v57, 15
    %v115 = vpop.permute.xlu0 %114
    %vm116 = vcmask 121856
    %v117 = vsel %vm116, %v113, %v115
    %v120 = vsel %vm116, 0.0, %v113
    %v121 = vsel %vm87, %v120, 0.0
    %v122 = vsel %vm88, %v117, 0.0
    %123 = vrot.lane.b32.xlu0 %v56, 1
    %v124 = vpop.permute.xlu0 %123
    %125 = vrot.lane.b32.xlu0 %v57, 1
    %v126 = vpop.permute.xlu0 %125
    %vm127 = vcmask 7168
    %v128 = vsel %vm127, %v124, %v126
    %v131 = vsel %vm127, 0.0, %v124
    %v132 = vsel %vm85, %v131, 0.0
    %v133 = vsel %vm86, %v128, 0.0
    %134 = vrot.lane.b32.xlu0 %v56, 127
    %v135 = vpop.permute.xlu0 %134
    %136 = vrot.lane.b32.xlu0 %v57, 127
    %v137 = vpop.permute.xlu0 %136
    %vm138 = vcmask 1039360
    %v139 = vsel %vm138, %v135, %v137
    %v142 = vsel %vm138, %v137, 0.0
    %v143 = vsel %vm87, %v139, 0.0
    %v144 = vsel %vm88, %v142, 0.0
    %145 = vrot.lane.b32.xlu0 %v56, 113
    %v146 = vpop.permute.xlu0 %145
    %147 = vrot.lane.b32.xlu0 %v57, 113
    %v148 = vpop.permute.xlu0 %147
    %vm149 = vcmask 924672
    %v150 = vsel %vm149, %v146, %v148
    %v153 = vsel %vm149, %v148, 0.0
    %v154 = vsel %vm85, %v150, 0.0
    %v155 = vsel %vm86, %v153, 0.0
    %156 = vrot.lane.b32.xlu0 %v56, 112
    %v157 = vpop.permute.xlu0 %156
    %158 = vrot.lane.b32.xlu0 %v57, 112
    %v159 = vpop.permute.xlu0 %158
    %vm160 = vcmask 916480
    %v161 = vsel %vm160, %v157, %v159
    %v164 = vsel %vm160, %v159, 0.0
    %165 = vrot.lane.b32.xlu0 %v56, 111
    %v166 = vpop.permute.xlu0 %165
    %167 = vrot.lane.b32.xlu0 %v57, 111
    %v168 = vpop.permute.xlu0 %167
    %vm169 = vcmask 908288
    %v170 = vsel %vm169, %v166, %v168
    %v173 = vsel %vm169, %v168, 0.0
    %v174 = vsel %vm87, %v170, 0.0
    %v175 = vsel %vm88, %v173, 0.0
    %vm176 = vcmask 596992
    %v178 = vsel %vm176, %v89, 0
    %vm180 = vcmask 1040384
    %v182 = vsel %vm180, 1.0, 0
    %184 = vmatpush.msra.mxu0 0.0
    %185 = vmatpush.msra.mxu0 0.0
    %186 = vmatpush.msra.mxu0 0.0
    %187 = vmatpush.msra.mxu0 0.0
    %188 = vmatpush.msra.mxu0 0.0
    %189 = vmatpush.msra.mxu0 0.0
    %190 = vmatpush.msra.mxu0 %v182
    %191 = vmatpush.msra.mxu0 %v174
    %192 = vmatpush.msra.mxu0 %v161
    %193 = vmatpush.msra.mxu0 %v154
    %194 = vmatpush.msra.mxu0 %v143
    %195 = vmatpush.msra.mxu0 %v56
    %196 = vmatpush.msra.mxu0 %v132
    %197 = vmatpush.msra.mxu0 %v121
    %198 = vmatpush.msra.mxu0 %v111
    %199 = vmatpush.msra.mxu0 %v101
    %200 = vmatmul.f32.gmra.mxu0 %v178
    %v201 = vpop.f32.mrf.mxu0
    %v202 = vadd.f32 0.0, %v201
    %203 = vdwg.mxu0
    %204 = vmatpush.msra.mxu0 0.0
    %205 = vmatpush.msra.mxu0 0.0
    %206 = vmatpush.msra.mxu0 0.0
    %207 = vmatpush.msra.mxu0 0.0
    %208 = vmatpush.msra.mxu0 0.0
    %209 = vmatpush.msra.mxu0 0.0
    %210 = vmatpush.msra.mxu0 %v182
    %211 = vmatpush.msra.mxu0 %v175
    %212 = vmatpush.msra.mxu0 %v164
    %213 = vmatpush.msra.mxu0 %v155
    %214 = vmatpush.msra.mxu0 %v144
    %215 = vmatpush.msra.mxu0 %v57
    %216 = vmatpush.msra.mxu0 %v133
    %217 = vmatpush.msra.mxu0 %v122
    %218 = vmatpush.msra.mxu0 %v108
    %219 = vmatpush.msra.mxu0 %v102
    %220 = vmatmul.f32.gmra.mxu0 %v178
    %v221 = vpop.f32.mrf.mxu0
    %v222 = vadd.f32 0.0, %v221
    %223 = vdwg.mxu0
    %v224 = vmul.f32 %v202, 0.01
    %v225 = vmul.f32 %v222, 0.01
    %v226 = vmax.f32 %v202, %v224
    %v227 = vmax.f32 %v222, %v225
    %v228 = vld [vmem:[#allocation7] sm:$0xff]
    %231 = vrot.lane.b32.xlu0 %v226, 17
    %v232 = vpop.permute.xlu0 %231
    %233 = vrot.lane.b32.xlu0 %v227, 17
    %v234 = vpop.permute.xlu0 %233
    %v235 = vsel %vm96, %v232, %v234
    %v238 = vsel %vm96, 0.0, %v232
    %v239 = vsel %vm85, %v238, 0.0
    %v240 = vsel %vm86, %v235, 0.0
    %241 = vrot.lane.b32.xlu0 %v226, 16
    %v242 = vpop.permute.xlu0 %241
    %243 = vrot.lane.b32.xlu0 %v227, 16
    %v244 = vpop.permute.xlu0 %243
    %v245 = vsel %vm107, %v242, %v244
    %v248 = vsel %vm107, 0.0, %v242
    %249 = vrot.lane.b32.xlu0 %v226, 15
    %v250 = vpop.permute.xlu0 %249
    %251 = vrot.lane.b32.xlu0 %v227, 15
    %v252 = vpop.permute.xlu0 %251
    %v253 = vsel %vm116, %v250, %v252
    %v256 = vsel %vm116, 0.0, %v250
    %v257 = vsel %vm87, %v256, 0.0
    %v258 = vsel %vm88, %v253, 0.0
    %259 = vrot.lane.b32.xlu0 %v226, 1
    %v260 = vpop.permute.xlu0 %259
    %261 = vrot.lane.b32.xlu0 %v227, 1
    %v262 = vpop.permute.xlu0 %261
    %v263 = vsel %vm127, %v260, %v262
    %v266 = vsel %vm127, 0.0, %v260
    %v267 = vsel %vm85, %v266, 0.0
    %v268 = vsel %vm86, %v263, 0.0
    %269 = vrot.lane.b32.xlu0 %v226, 127
    %v270 = vpop.permute.xlu0 %269
    %271 = vrot.lane.b32.xlu0 %v227, 127
    %v272 = vpop.permute.xlu0 %271
    %v273 = vsel %vm138, %v270, %v272
    %v276 = vsel %vm138, %v272, 0.0
    %v277 = vsel %vm87, %v273, 0.0
    %v278 = vsel %vm88, %v276, 0.0
    %279 = vrot.lane.b32.xlu0 %v226, 113
    %v280 = vpop.permute.xlu0 %279
    %281 = vrot.lane.b32.xlu0 %v227, 113
    %v282 = vpop.permute.xlu0 %281
    %v283 = vsel %vm149, %v280, %v282
    %v286 = vsel %vm149, %v282, 0.0
    %v287 = vsel %vm85, %v283, 0.0
    %v288 = vsel %vm86, %v286, 0.0
    %289 = vrot.lane.b32.xlu0 %v226, 112
    %v290 = vpop.permute.xlu0 %289
    %291 = vrot.lane.b32.xlu0 %v227, 112
    %v292 = vpop.permute.xlu0 %291
    %v293 = vsel %vm160, %v290, %v292
    %v296 = vsel %vm160, %v292, 0.0
    %297 = vrot.lane.b32.xlu0 %v226, 111
    %v298 = vpop.permute.xlu0 %297
    %299 = vrot.lane.b32.xlu0 %v227, 111
    %v300 = vpop.permute.xlu0 %299
    %v301 = vsel %vm169, %v298, %v300
    %v304 = vsel %vm169, %v300, 0.0
    %v305 = vsel %vm87, %v301, 0.0
    %v306 = vsel %vm88, %v304, 0.0
    %v308 = vsel %vm176, %v228, 0
    %310 = vmatpush.msra.mxu0 0.0
    %311 = vmatpush.msra.mxu0 0.0
    %312 = vmatpush.msra.mxu0 0.0
    %313 = vmatpush.msra.mxu0 0.0
    %314 = vmatpush.msra.mxu0 0.0
    %315 = vmatpush.msra.mxu0 0.0
    %316 = vmatpush.msra.mxu0 %v182
    %317 = vmatpush.msra.mxu0 %v305
    %318 = vmatpush.msra.mxu0 %v293
    %319 = vmatpush.msra.mxu0 %v287
    %320 = vmatpush.msra.mxu0 %v277
    %321 = vmatpush.msra.mxu0 %v226
    %322 = vmatpush.msra.mxu0 %v267
    %323 = vmatpush.msra.mxu0 %v257
    %324 = vmatpush.msra.mxu0 %v248
    %325 = vmatpush.msra.mxu0 %v239
    %326 = vmatmul.f32.gmra.mxu0 %v308
    %v327 = vpop.f32.mrf.mxu0
    %v328 = vadd.f32 0.0, %v327
    %329 = vdwg.mxu0
    %330 = vmatpush.msra.mxu0 0.0
    %331 = vmatpush.msra.mxu0 0.0
    %332 = vmatpush.msra.mxu0 0.0
    %333 = vmatpush.msra.mxu0 0.0
    %334 = vmatpush.msra.mxu0 0.0
    %335 = vmatpush.msra.mxu0 0.0
    %336 = vmatpush.msra.mxu0 %v182
    %337 = vmatpush.msra.mxu0 %v306
    %338 = vmatpush.msra.mxu0 %v296
    %339 = vmatpush.msra.mxu0 %v288
    %340 = vmatpush.msra.mxu0 %v278
    %341 = vmatpush.msra.mxu0 %v227
    %342 = vmatpush.msra.mxu0 %v268
    %343 = vmatpush.msra.mxu0 %v258
    %344 = vmatpush.msra.mxu0 %v245
    %345 = vmatpush.msra.mxu0 %v240
    %346 = vmatmul.f32.gmra.mxu0 %v308
    %v347 = vpop.f32.mrf.mxu0
    %v348 = vadd.f32 0.0, %v347
    %349 = vdwg.mxu0
    %v350 = vadd.f32 %v56, %v328
    %v351 = vadd.f32 %v57, %v348
    %v352 = vmul.f32 %v350, 0.01
    %v353 = vmul.f32 %v351, 0.01
    %v354 = vmax.f32 %v350, %v352
    %v355 = vmax.f32 %v351, %v353
    %356 = vst [vmem:[#allocation8] sm:$0xff] %v354
    %357 = vst [vmem:[#allocation8 + $0x8] sm:$0xff] %v355
    // Predicated region
    $region26: #{tpu_custom_call.1} parent=1 // pred_check
      _
    $region27: #{tpu_custom_call.1} parent=1 // pred_check_branch
      %359 = sbr.rel (0) target = $region29
    $region28: #{tpu_custom_call.1} parent=1 // pred_region
      %361 = vsyncadd [#allocation4], 0
      %s363 = sshll.u32 [#allocation8], 4
      %s364 = int_to_ptr.vmem [resolvable:$true] %s363
      %s365 = sshll.u32 %s3, 4
      %s366 = int_to_ptr.hbm [resolvable:$true] %s365
      %368 = dma.vmem_to_hbm [thread:$0]  %s364, 256, %s366, [#allocation4]
    $region29: #{tpu_custom_call.1} parent=1 // pred_fallthru
      _
    // Predicated region
    $region30: #{tpu_custom_call.1} parent=1 // pred_check
      _
    $region31: #{tpu_custom_call.1} parent=1 // pred_check_branch
      %370 = sbr.rel (0) target = $region33
    $region32: #{tpu_custom_call.1} parent=1 // pred_region
      %372 = dma.done [#allocation4], 256
    $region33: #{tpu_custom_call.1} parent=1 // pred_fallthru
      _
    %373 = vsyncpa [#allocation3], 1
    %374 = vsyncpa [#allocation6], 1
    %375 = vsyncpa [#allocation4], 1

</llo_original>
